<compile_context>
chip_gen: v6e
topology: v6e:2x2x1
jax: 0.10.0
libtpu: 0.0.40
codegen_flags: <defaults>
</compile_context>

<pallas_src>
import functools
import math

import jax
import jax.numpy as jnp
from jax.experimental import pallas as pl
from jax.experimental.pallas import tpu as pltpu


# ----------------------------- Pallas kernel --------------------------------
def _attention_kernel(x_ref, wqkv_ref, wo_ref, o_ref,
                      theta_ref, phit_ref, g_ref, *, s4, tq, c8, c2):
    q = pl.program_id(1)

    # ---- once per batch element: fused QKV projection + 2x2 max-pool --------
    @pl.when(q == 0)
    def _():
        xb = x_ref[0].astype(jnp.bfloat16)                        # (HW, C)
        qkv = jnp.dot(xb, wqkv_ref[...],
                      preferred_element_type=jnp.float32)         # (HW, 2*C8 + C2)
        theta_ref[...] = qkv[:, :c8].astype(jnp.bfloat16)         # (HW, C8)
        pw = qkv[:, c8:2 * c8]                                    # (HW, C8)
        gw = qkv[:, 2 * c8:]                                      # (HW, C2)
        # 2x2 max-pool == elementwise max over the 4 window-offset slabs (f32)
        phi = jnp.maximum(jnp.maximum(pw[0:s4], pw[s4:2 * s4]),
                          jnp.maximum(pw[2 * s4:3 * s4], pw[3 * s4:4 * s4]))
        g = jnp.maximum(jnp.maximum(gw[0:s4], gw[s4:2 * s4]),
                        jnp.maximum(gw[2 * s4:3 * s4], gw[3 * s4:4 * s4]))
        phit_ref[...] = jnp.transpose(phi).astype(jnp.bfloat16)   # (C8, S4)
        g_ref[...] = g.astype(jnp.bfloat16)                       # (S4, C2)

    # ---- per query tile ------------------------------------------------------
    row0 = q * tq
    if tq % 8 == 0:
        row0 = pl.multiple_of(row0, 8)
    theta_t = theta_ref[pl.ds(row0, tq), :]                       # (TQ, C8) bf16
    x_t = x_ref[0, pl.ds(row0, tq), :]                            # (TQ, C)  f32 residual

    # attention logits over pooled keys, f32 accumulation
    attn = jnp.dot(theta_t, phit_ref[...],
                   preferred_element_type=jnp.float32)            # (TQ, S4)

    # softmax in f32; divide replaced by EUP reciprocal
    attn = attn - jnp.max(attn, axis=-1, keepdims=True)
    e = jnp.exp(attn)
    inv = pl.reciprocal(jnp.sum(e, axis=-1, keepdims=True), approx=True)
    beta = (e * inv).astype(jnp.bfloat16)                         # (TQ, S4)

    # weighted sum of values and output 1x1 conv (gamma folded into Wo)
    o_pre = jnp.dot(beta, g_ref[...],
                    preferred_element_type=jnp.float32)           # (TQ, C2)
    o = jnp.dot(o_pre.astype(jnp.bfloat16), wo_ref[...],
                preferred_element_type=jnp.float32)               # (TQ, C)

    o_ref[0] = o + x_t


def _choose_tq(hw, target=512):
    """Query tile size: divides HW, multiple of 8 (or the full HW)."""
    tq = math.gcd(hw, target)
    if tq != hw and tq % 8 != 0:
        return hw
    return tq


# ------------------------------ wrapper --------------------------------------
def attention_pallas(x_nchw, params):
    B, C, H, W = x_nchw.shape
    HW = H * W
    S4 = HW // 4
    C8, C2 = C // 8, C // 2
    CQKV = 2 * C8 + C2

    # layout glue: NCHW -> channel-last, slab-ordered spatial (single copy of x)
    # slab k = dh*2 + dw ; row within slab = hp*(W//2) + wp
    xr = jnp.transpose(x_nchw, (0, 2, 3, 1)).reshape(B, H // 2, 2, W // 2, 2, C)
    x_win = jnp.transpose(xr, (0, 2, 4, 1, 3, 5)).reshape(B, HW, C).astype(jnp.float32)

    # fused QKV projection weight (bf16) and gamma folded into the output weight
    w_qkv = jnp.concatenate(
        [params["w_theta"], params["w_phi"], params["w_g"]], axis=1
    ).astype(jnp.bfloat16)                                        # (C, 2*C8 + C2)
    gamma = jnp.asarray(params["gamma"], jnp.float32)
    w_o = (gamma * jnp.asarray(params["w_o"], jnp.float32)).astype(jnp.bfloat16)

    TQ = _choose_tq(HW)
    NQ = HW // TQ

    kernel = functools.partial(_attention_kernel, s4=S4, tq=TQ, c8=C8, c2=C2)

    # rough VMEM budget (tiles, weights, persistent scratch, live intermediates)
    est = (
        2 * HW * C * 4                       # x block (double-buffered, f32)
        + 2 * TQ * C * 4                     # output tile (double-buffered, f32)
        + 2 * (C * CQKV + C2 * C) * 2        # weights (double-buffered, bf16)
        + HW * C8 * 2 + S4 * (C8 + C2) * 2   # persistent theta / phi^T / g scratch
        + HW * CQKV * 4 + HW * C * 2         # q==0 qkv intermediate + bf16 x copy
        + 4 * TQ * S4 * 4                    # logits / exp / beta temporaries
        + TQ * (C2 + C) * 4                  # o_pre / o
    )
    vmem_limit = int(min(max(2 * est, 32 * 1024 * 1024), 48 * 1024 * 1024))

    grid_spec = pltpu.PrefetchScalarGridSpec(
        num_scalar_prefetch=0,
        grid=(B, NQ),
        in_specs=[
            pl.BlockSpec((1, HW, C), lambda b, q: (b, 0, 0)),     # x (resident across q)
            pl.BlockSpec((C, CQKV), lambda b, q: (0, 0)),         # fused W_qkv
            pl.BlockSpec((C2, C), lambda b, q: (0, 0)),           # gamma * W_o
        ],
        out_specs=pl.BlockSpec((1, TQ, C), lambda b, q: (b, q, 0)),
        scratch_shapes=[
            pltpu.VMEM((HW, C8), jnp.bfloat16),                   # theta (all queries)
            pltpu.VMEM((C8, S4), jnp.bfloat16),                   # phi^T (pooled keys)
            pltpu.VMEM((S4, C2), jnp.bfloat16),                   # g (pooled values)
        ],
    )

    out_win = pl.pallas_call(
        kernel,
        out_shape=jax.ShapeDtypeStruct((B, HW, C), jnp.float32),
        grid_spec=grid_spec,
        compiler_params=pltpu.CompilerParams(
            dimension_semantics=("parallel", "arbitrary"),
            vmem_limit_bytes=vmem_limit,
        ),
    )(x_win, w_qkv, w_o)

    # undo the slab permutation and return NCHW
    out = out_win.reshape(B, 2, 2, H // 2, W // 2, C)
    out = jnp.transpose(out, (0, 3, 1, 4, 2, 5)).reshape(B, H, W, C)
    return jnp.transpose(out, (0, 3, 1, 2))


# ---------------- spectral norm (parameter preprocessing, plain JAX) ---------
# TODO(synk): SN power-iteration buffer updates (training-time side effects) are
# parameter preprocessing, kept outside the Pallas kernel.
def sn_weight(w4, u, eps=1e-12):
    """One power-iteration step, num_svs=1 (matches SN.W_() forward value)."""
    out = w4.shape[0]
    Wm = w4.reshape(out, -1)                                 # (out, in)
    v = u @ Wm                                               # (1, in)
    v = v / jnp.maximum(jnp.linalg.norm(v), eps)
    un = v @ Wm.T                                            # (1, out)
    un = un / jnp.maximum(jnp.linalg.norm(un), eps)
    sv = jnp.squeeze((v @ Wm.T) @ un.T)                      # scalar
    return Wm / sv                                           # (out, in)


# ------------------------ pure-JAX reference (for checking) ------------------
def reference(x, Wth, Wph, Wg, Wo, gamma):
    B, C, H, Wd = x.shape
    C8, C2 = C // 8, C // 2
    theta = jnp.einsum("oc,bchw->bohw", Wth, x)
    phi = jnp.einsum("oc,bchw->bohw", Wph, x)
    g = jnp.einsum("oc,bchw->bohw", Wg, x)

    def pool(t):
        Bo, O, Hh, Ww = t.shape
        return jnp.max(t.reshape(Bo, O, Hh // 2, 2, Ww // 2, 2), axis=(3, 5))

    phi, g = pool(phi), pool(g)
    HW = H * Wd
    theta = theta.reshape(B, C8, HW)
    phi = phi.reshape(B, C8, HW // 4)
    g = g.reshape(B, C2, HW // 4)
    logits = jnp.einsum("bck,bcl->bkl", theta, phi)
    beta = jax.nn.softmax(logits, axis=-1)
    o = jnp.einsum("bcl,bkl->bck", g, beta).reshape(B, C2, H, Wd)
    o = jnp.einsum("oc,bchw->bohw", Wo, o)
    return gamma * o + x


# --------------------------------- main ---------------------------------------
if __name__ == "__main__":
    key = jax.random.PRNGKey(0)
    B, C, H, W = 2, 64, 8, 8          # ch must be divisible by 8, spatial even
    C8, C2 = C // 8, C // 2
    ks = jax.random.split(key, 9)

    x = jax.random.normal(ks[0], (B, C, H, W), jnp.float32)

    # deterministic parameter init (shapes from the module's __init__)
    w_theta4 = jax.random.normal(ks[1], (C8, C, 1, 1), jnp.float32) * 0.05
    w_phi4   = jax.random.normal(ks[2], (C8, C, 1, 1), jnp.float32) * 0.05
    w_g4     = jax.random.normal(ks[3], (C2, C, 1, 1), jnp.float32) * 0.05
    w_o4     = jax.random.normal(ks[4], (C, C2, 1, 1), jnp.float32) * 0.05
    u_theta  = jax.random.normal(ks[5], (1, C8), jnp.float32)   # SN `u0` buffers
    u_phi    = jax.random.normal(ks[6], (1, C8), jnp.float32)
    u_g      = jax.random.normal(ks[7], (1, C2), jnp.float32)
    u_o      = jax.random.normal(ks[8], (1, C), jnp.float32)

    # spectral-norm weight preprocessing (glue)
    Wth = sn_weight(w_theta4, u_theta)   # (C8, C)
    Wph = sn_weight(w_phi4, u_phi)       # (C8, C)
    Wg  = sn_weight(w_g4, u_g)           # (C2, C)
    Wo  = sn_weight(w_o4, u_o)           # (C, C2)

    params = dict(
        w_theta=Wth.T,   # (C, C8)
        w_phi=Wph.T,     # (C, C8)
        w_g=Wg.T,        # (C, C2)
        w_o=Wo.T,        # (C2, C)
        gamma=jnp.float32(0.0),   # module initializes gamma to 0.0
    )

    # 1) module-default gamma=0: output must equal x (exact path, f32 residual)
    out0 = jax.block_until_ready(attention_pallas(x, params))
    ref0 = reference(x, Wth, Wph, Wg, Wo, jnp.float32(0.0))
    assert out0.shape == x.shape
    assert jnp.allclose(out0, ref0, atol=1e-4, rtol=1e-4)

    # 2) nonzero gamma exercises the attention path (bf16 MXU -> looser tolerance)
    params1 = dict(params, gamma=jnp.float32(1.0))
    out1 = jax.block_until_ready(attention_pallas(x, params1))
    ref1 = reference(x, Wth, Wph, Wg, Wo, jnp.float32(1.0))
    assert jnp.allclose(out1, ref1, atol=5e-2, rtol=5e-2), float(
        jnp.max(jnp.abs(out1 - ref1)))

    print("KERNEL_OK")
</pallas_src>

<mosaic_0001>
module attributes {stable_mosaic.version = 11 : i64} {
  func.func @_attention_kernel(%arg0: i32, %arg1: i32, %arg2: memref<1x64x64xf32, #tpu.memory_space<vmem>>, %arg3: memref<64x48xbf16, #tpu.memory_space<vmem>>, %arg4: memref<32x64xbf16, #tpu.memory_space<vmem>>, %arg5: memref<1x64x64xf32, #tpu.memory_space<vmem>>, %arg6: memref<64x8xbf16, #tpu.memory_space<vmem>>, %arg7: memref<8x16xbf16, #tpu.memory_space<vmem>>, %arg8: memref<16x32xbf16, #tpu.memory_space<vmem>>) attributes {dimension_semantics = [#tpu.dimension_semantics<parallel>, #tpu.dimension_semantics<arbitrary>], iteration_bounds = array<i64: 2, 1>, scalar_prefetch = 0 : i64, scratch_operands = 3 : i64, tpu.core_type = #tpu.core_type<tc>, window_params = [{transform_indices = @transform_0, window_bounds = array<i64: 1, 64, 64>}, {pipeline_mode = #tpu.pipeline_mode<synchronous>, transform_indices = @transform_1, window_bounds = array<i64: 64, 48>}, {pipeline_mode = #tpu.pipeline_mode<synchronous>, transform_indices = @transform_2, window_bounds = array<i64: 32, 64>}, {transform_indices = @transform_3, window_bounds = array<i64: 1, 64, 64>}]} {
    %c0_i32 = arith.constant 0 : i32
    %0 = arith.cmpi eq, %arg1, %c0_i32 : i32
    %1 = arith.extui %0 : i1 to i32
    %c0_i32_0 = arith.constant 0 : i32
    %2 = arith.cmpi ne, %1, %c0_i32_0 : i32
    scf.if %2 {
      %c0_16 = arith.constant 0 : index
      %c0_17 = arith.constant 0 : index
      %c0_18 = arith.constant 0 : index
      %32 = vector.load %arg2[%c0_16, %c0_17, %c0_18] : memref<1x64x64xf32, #tpu.memory_space<vmem>>, vector<1x64x64xf32>
      %33 = vector.shape_cast %32 : vector<1x64x64xf32> to vector<64x64xf32>
      %34 = arith.truncf %33 : vector<64x64xf32> to vector<64x64xbf16>
      %c0_19 = arith.constant 0 : index
      %c0_20 = arith.constant 0 : index
      %35 = vector.load %arg3[%c0_19, %c0_20] : memref<64x48xbf16, #tpu.memory_space<vmem>>, vector<64x48xbf16>
      %cst_21 = arith.constant dense<0.000000e+00> : vector<64x48xf32>
      %36 = tpu.matmul %34, %35, %cst_21 {dimension_numbers = #tpu.dot_dimension_numbers<[1], [0], [0], [1], [0, 0, 1, 1], [], []>} : vector<64x64xbf16>, vector<64x48xbf16>, vector<64x48xf32> -> vector<64x48xf32>
      %37 = vector.extract_strided_slice %36 {offsets = [0, 0], sizes = [64, 8], strides = [1, 1]} : vector<64x48xf32> to vector<64x8xf32>
      %38 = arith.truncf %37 : vector<64x8xf32> to vector<64x8xbf16>
      %c0_22 = arith.constant 0 : index
      %c0_23 = arith.constant 0 : index
      %39 = vector.load %arg6[%c0_22, %c0_23] : memref<64x8xbf16, #tpu.memory_space<vmem>>, vector<64x8xbf16>
      tpu.vector_store %arg6[%c0_22, %c0_23], %38 {strides = array<i32>} : memref<64x8xbf16, #tpu.memory_space<vmem>>, vector<64x8xbf16>,
      %40 = vector.extract_strided_slice %36 {offsets = [0, 8], sizes = [64, 8], strides = [1, 1]} : vector<64x48xf32> to vector<64x8xf32>
      %41 = vector.extract_strided_slice %36 {offsets = [0, 16], sizes = [64, 32], strides = [1, 1]} : vector<64x48xf32> to vector<64x32xf32>
      %42 = vector.extract_strided_slice %40 {offsets = [0, 0], sizes = [16, 8], strides = [1, 1]} : vector<64x8xf32> to vector<16x8xf32>
      %43 = vector.extract_strided_slice %40 {offsets = [16, 0], sizes = [16, 8], strides = [1, 1]} : vector<64x8xf32> to vector<16x8xf32>
      %44 = arith.maximumf %42, %43 : vector<16x8xf32>
      %45 = vector.extract_strided_slice %40 {offsets = [32, 0], sizes = [16, 8], strides = [1, 1]} : vector<64x8xf32> to vector<16x8xf32>
      %46 = vector.extract_strided_slice %40 {offsets = [48, 0], sizes = [16, 8], strides = [1, 1]} : vector<64x8xf32> to vector<16x8xf32>
      %47 = arith.maximumf %45, %46 : vector<16x8xf32>
      %48 = arith.maximumf %44, %47 : vector<16x8xf32>
      %49 = vector.extract_strided_slice %41 {offsets = [0, 0], sizes = [16, 32], strides = [1, 1]} : vector<64x32xf32> to vector<16x32xf32>
      %50 = vector.extract_strided_slice %41 {offsets = [16, 0], sizes = [16, 32], strides = [1, 1]} : vector<64x32xf32> to vector<16x32xf32>
      %51 = arith.maximumf %49, %50 : vector<16x32xf32>
      %52 = vector.extract_strided_slice %41 {offsets = [32, 0], sizes = [16, 32], strides = [1, 1]} : vector<64x32xf32> to vector<16x32xf32>
      %53 = vector.extract_strided_slice %41 {offsets = [48, 0], sizes = [16, 32], strides = [1, 1]} : vector<64x32xf32> to vector<16x32xf32>
      %54 = arith.maximumf %52, %53 : vector<16x32xf32>
      %55 = arith.maximumf %51, %54 : vector<16x32xf32>
      %56 = tpu.transpose %48, [1, 0] : vector<16x8xf32> -> vector<8x16xf32>
      %57 = arith.truncf %56 : vector<8x16xf32> to vector<8x16xbf16>
      %c0_24 = arith.constant 0 : index
      %c0_25 = arith.constant 0 : index
      %58 = vector.load %arg7[%c0_24, %c0_25] : memref<8x16xbf16, #tpu.memory_space<vmem>>, vector<8x16xbf16>
      tpu.vector_store %arg7[%c0_24, %c0_25], %57 {strides = array<i32>} : memref<8x16xbf16, #tpu.memory_space<vmem>>, vector<8x16xbf16>,
      %59 = arith.truncf %55 : vector<16x32xf32> to vector<16x32xbf16>
      %c0_26 = arith.constant 0 : index
      %c0_27 = arith.constant 0 : index
      %60 = vector.load %arg8[%c0_26, %c0_27] : memref<16x32xbf16, #tpu.memory_space<vmem>>, vector<16x32xbf16>
      tpu.vector_store %arg8[%c0_26, %c0_27], %59 {strides = array<i32>} : memref<16x32xbf16, #tpu.memory_space<vmem>>, vector<16x32xbf16>,
    } else {
    }
    %c64_i32 = arith.constant 64 : i32
    %3 = arith.muli %arg1, %c64_i32 : i32
    %4 = tpu.assume_multiple %3, 8 : i32
    %5 = arith.index_cast %4 : i32 to index
    %c0 = arith.constant 0 : index
    %6 = vector.load %arg6[%5, %c0] : memref<64x8xbf16, #tpu.memory_space<vmem>>, vector<64x8xbf16>
    %c0_1 = arith.constant 0 : index
    %7 = arith.index_cast %4 : i32 to index
    %c0_2 = arith.constant 0 : index
    %8 = vector.load %arg2[%c0_1, %7, %c0_2] : memref<1x64x64xf32, #tpu.memory_space<vmem>>, vector<1x64x64xf32>
    %9 = vector.shape_cast %8 : vector<1x64x64xf32> to vector<64x64xf32>
    %c0_3 = arith.constant 0 : index
    %c0_4 = arith.constant 0 : index
    %10 = vector.load %arg7[%c0_3, %c0_4] : memref<8x16xbf16, #tpu.memory_space<vmem>>, vector<8x16xbf16>
    %cst = arith.constant dense<0.000000e+00> : vector<64x16xf32>
    %11 = tpu.matmul %6, %10, %cst {dimension_numbers = #tpu.dot_dimension_numbers<[1], [0], [0], [1], [0, 0, 1, 1], [], []>} : vector<64x8xbf16>, vector<8x16xbf16>, vector<64x16xf32> -> vector<64x16xf32>
    %cst_5 = arith.constant dense<0xFF800000> : vector<64xf32>
    %12 = vector.multi_reduction <maximumf>, %11, %cst_5 [1] : vector<64x16xf32> to vector<64xf32>
    %13 = vector.shape_cast %12 : vector<64xf32> to vector<64x1xf32>
    %14 = vector.broadcast %13 : vector<64x1xf32> to vector<64x16xf32>
    %15 = arith.subf %11, %14 : vector<64x16xf32>
    %16 = math.exp %15 : vector<64x16xf32>
    %cst_6 = arith.constant dense<0.000000e+00> : vector<64xf32>
    %17 = vector.multi_reduction <add>, %16, %cst_6 [1] : vector<64x16xf32> to vector<64xf32>
    %18 = vector.shape_cast %17 : vector<64xf32> to vector<64x1xf32>
    %19 = tpu.reciprocal %18 {approx = true} : vector<64x1xf32> -> vector<64x1xf32>
    %20 = vector.broadcast %19 : vector<64x1xf32> to vector<64x16xf32>
    %21 = arith.mulf %16, %20 : vector<64x16xf32>
    %22 = arith.truncf %21 : vector<64x16xf32> to vector<64x16xbf16>
    %c0_7 = arith.constant 0 : index
    %c0_8 = arith.constant 0 : index
    %23 = vector.load %arg8[%c0_7, %c0_8] : memref<16x32xbf16, #tpu.memory_space<vmem>>, vector<16x32xbf16>
    %cst_9 = arith.constant dense<0.000000e+00> : vector<64x32xf32>
    %24 = tpu.matmul %22, %23, %cst_9 {dimension_numbers = #tpu.dot_dimension_numbers<[1], [0], [0], [1], [0, 0, 1, 1], [], []>} : vector<64x16xbf16>, vector<16x32xbf16>, vector<64x32xf32> -> vector<64x32xf32>
    %25 = arith.truncf %24 : vector<64x32xf32> to vector<64x32xbf16>
    %c0_10 = arith.constant 0 : index
    %c0_11 = arith.constant 0 : index
    %26 = vector.load %arg4[%c0_10, %c0_11] : memref<32x64xbf16, #tpu.memory_space<vmem>>, vector<32x64xbf16>
    %cst_12 = arith.constant dense<0.000000e+00> : vector<64x64xf32>
    %27 = tpu.matmul %25, %26, %cst_12 {dimension_numbers = #tpu.dot_dimension_numbers<[1], [0], [0], [1], [0, 0, 1, 1], [], []>} : vector<64x32xbf16>, vector<32x64xbf16>, vector<64x64xf32> -> vector<64x64xf32>
    %28 = arith.addf %27, %9 : vector<64x64xf32>
    %c0_13 = arith.constant 0 : index
    %c0_14 = arith.constant 0 : index
    %c0_15 = arith.constant 0 : index
    %29 = vector.load %arg5[%c0_13, %c0_14, %c0_15] : memref<1x64x64xf32, #tpu.memory_space<vmem>>, vector<1x64x64xf32>
    %30 = vector.shape_cast %29 : vector<1x64x64xf32> to vector<64x64xf32>
    %31 = vector.shape_cast %28 : vector<64x64xf32> to vector<1x64x64xf32>
    tpu.vector_store %arg5[%c0_13, %c0_14, %c0_15], %31 {strides = array<i32>} : memref<1x64x64xf32, #tpu.memory_space<vmem>>, vector<1x64x64xf32>,
    return
  }
  func.func @transform_0(%arg0: i32, %arg1: i32) -> (i32, i32, i32) {
    %c0_i32 = arith.constant 0 : i32
    %c0_i32_0 = arith.constant 0 : i32
    %c0_i32_1 = arith.constant 0 : i32
    return %arg0, %c0_i32, %c0_i32_0 : i32, i32, i32
  }
  func.func @transform_1(%arg0: i32, %arg1: i32) -> (i32, i32) {
    %c0_i32 = arith.constant 0 : i32
    %c0_i32_0 = arith.constant 0 : i32
    %c0_i32_1 = arith.constant 0 : i32
    return %c0_i32, %c0_i32_0 : i32, i32
  }
  func.func @transform_2(%arg0: i32, %arg1: i32) -> (i32, i32) {
    %c0_i32 = arith.constant 0 : i32
    %c0_i32_0 = arith.constant 0 : i32
    %c0_i32_1 = arith.constant 0 : i32
    return %c0_i32, %c0_i32_0 : i32, i32
  }
  func.func @transform_3(%arg0: i32, %arg1: i32) -> (i32, i32, i32) {
    %c0_i32 = arith.constant 0 : i32
    %c0_i32_0 = arith.constant 0 : i32
    return %arg0, %arg1, %c0_i32 : i32, i32, i32
  }
}

</mosaic_0001>

<llo_original>
// kernel: tpu_custom_call.1
$region0: #{tpu_custom_call.1}
  #allocation0 [shape = 'u32[]', space=smem, size = 0x4, offset = 0x4, fixed_abs, tag = 'smem constant byte address 0x4 - core index']
  #allocation1 [shape = 'u32[144,128]{1,0:T(1,128)}', space=vmem, size = 0x12000, scoped, tag = 'internal scratch']
  #allocation2 [shape = 'bf16[64,8]{1,0:T(8,128)(2,1)}', space=vmem, size = 0x4000, scoped, tag = 'scratch operand']
  #allocation3 [shape = 'bf16[8,16]{1,0:T(8,128)(2,1)}', space=vmem, size = 0x800, scoped, tag = 'scratch operand']
  #allocation4 [shape = 'bf16[16,32]{1,0:T(8,128)(2,1)}', space=vmem, size = 0x1000, scoped, tag = 'scratch operand']
  %s0 = inlined_call_operand.hbm [shape: f32[2,64,64], index: 0, kind: input, shape index: {}]
  %s1 = inlined_call_operand.vmem [shape: bf16[64,48], index: 1, kind: input, shape index: {}]
  %s2 = inlined_call_operand.vmem [shape: bf16[32,64], index: 2, kind: input, shape index: {}]
  %s3 = inlined_call_operand.hbm [shape: f32[2,64,64], index: 3, kind: output, shape index: {}]
  %s4 = sld [smem:[#allocation0]]
  $region53: #{tpu_custom_call.1} parent=0
    _
  %s6 = ssub.s32 1, %s4
  %s7 = scalar_select 0, %s6, %s4
  $region1: #{tpu_custom_call.1} parent=0
    #allocation5 [shape = 'u8[65536]{0}', space=vmem, size = 0x10000, scoped, tag = 'input window, operand 0']
    #allocation6 [shape = 's32[2]{0}', space=sflag, size = 0x8, scoped, tag = 'scoped memory for tpu_custom_call.1']
    #allocation7 [shape = 's32[2]{0}', space=sflag, size = 0x8, scoped, tag = 'scoped memory for tpu_custom_call.1']
    #allocation8 [shape = 'u8[65536]{0}', space=vmem, size = 0x10000, scoped, tag = 'output window, operand 0']
    %8 = vsyncpa [#allocation6], 0
    %s9 = scalar_lea.sflag [#allocation6], 1
    %10 = vsyncpa %s9, 0
    %11 = vsyncpa [#allocation7], 0
    %s12 = scalar_lea.sflag [#allocation7], 1
    %13 = vsyncpa %s12, 0
    loop: start=0, step=1, limit=4
    $region2: #{tpu_custom_call.1} parent=1 // loop_pre_header
      _
    $region3: #{tpu_custom_call.1} parent=1 // loop_header
      %s15 = sphi 0, %s19
      %p16 = scmp.ge.s32.totalorder %s15, 4
      %s22 = sphi 0, %s34
      %s23 = sphi 0, %s30
      %s24 = sphi 0, %s22
      %s25 = sphi 0, %s23
      %s26 = sphi 0, %s24
      %s27 = sphi 0, %s25
      %s37 = sphi 0, %s39
      %s40 = sphi 0, %s37
      %s41 = sphi 0, %s40
      %s57 = sphi 0, %s41
      %s61 = sphi 0, %s61
      %s63 = sphi 0, %s61
      %s64 = sphi 0, %s63
      %s78 = sphi 0, %s64
      %s82 = sphi 0, %s82
      %s84 = sphi 0, %s82
      %s85 = sphi 0, %s84
      %s99 = sphi 0, %s85
      %s107 = sphi 0, %s109
      %s110 = sphi 0, %s107
      %s111 = sphi 0, %s110
      %s127 = sphi 0, %s111
    $region4: #{tpu_custom_call.1} parent=1 // loop_header_branch
      %18 = sbr.rel (%p16) target = $region8
    $region5: #{tpu_custom_call.1} parent=1 // loop_body
      %s20 = ssub.s32 %s15, 1
      %s21 = ssub.s32 %s15, 2
      %s28 = sadd.s32 1, %s23
      %p29 = scmp.ge.s32.totalorder %s28, 1
      %s30 = scalar_select %p29, 0, %s28
      %s31 = sadd.s32 1, %s22
      %s32 = scalar_select %p29, %s31, %s22
      %p33 = scmp.ge.s32.totalorder %s32, 2
      %s34 = scalar_select %p33, 0, %s32
      %s35 = ssub.s32 %s22, %s34
      %p36 = scmp.eq.s32.totalorder %s35, 0
      %s38 = sadd.s32 %s37, 1
      %s39 = scalar_select %p36, %s37, %s38
      %p42 = pneg %p36
      %p43 = scmp.eq.s32.totalorder %s15, 1
      %p44 = por %p42, %p43
      %p45 = scmp.ne.s32.totalorder %s37, %s40
      %p46 = scmp.eq.s32.totalorder %s15, 0
      %p47 = por %p45, %p46
      %p48 = scmp.ne.s32.totalorder %s37, %s40
      %p49 = scmp.eq.s32.totalorder %s20, 1
      %p50 = por %p48, %p49
      %p51 = scmp.ne.s32.totalorder %s40, %s41
      %p52 = scmp.eq.s32.totalorder %s20, 0
      %p53 = por %p51, %p52
      %p54 = scmp.ne.s32.totalorder %s40, %s41
      %p55 = scmp.eq.s32.totalorder %s21, 1
      %p56 = por %p54, %p55
      %p58 = scmp.ne.s32.totalorder %s41, %s57
      %p59 = scmp.eq.s32.totalorder %s21, 0
      %p60 = por %p58, %p59
      %s62 = sadd.s32 %s61, 1
      %p65 = scmp.eq.s32.totalorder %s15, 1
      %p66 = scmp.ne.s32.totalorder %s61, %s63
      %p67 = scmp.eq.s32.totalorder %s15, 0
      %p68 = por %p66, %p67
      %p69 = scmp.ne.s32.totalorder %s61, %s63
      %p70 = scmp.eq.s32.totalorder %s20, 1
      %p71 = por %p69, %p70
      %p72 = scmp.ne.s32.totalorder %s63, %s64
      %p73 = scmp.eq.s32.totalorder %s20, 0
      %p74 = por %p72, %p73
      %p75 = scmp.ne.s32.totalorder %s63, %s64
      %p76 = scmp.eq.s32.totalorder %s21, 1
      %p77 = por %p75, %p76
      %p79 = scmp.ne.s32.totalorder %s64, %s78
      %p80 = scmp.eq.s32.totalorder %s21, 0
      %p81 = por %p79, %p80
      %s83 = sadd.s32 %s82, 1
      %p86 = scmp.eq.s32.totalorder %s15, 1
      %p87 = scmp.ne.s32.totalorder %s82, %s84
      %p88 = scmp.eq.s32.totalorder %s15, 0
      %p89 = por %p87, %p88
      %p90 = scmp.ne.s32.totalorder %s82, %s84
      %p91 = scmp.eq.s32.totalorder %s20, 1
      %p92 = por %p90, %p91
      %p93 = scmp.ne.s32.totalorder %s84, %s85
      %p94 = scmp.eq.s32.totalorder %s20, 0
      %p95 = por %p93, %p94
      %p96 = scmp.ne.s32.totalorder %s84, %s85
      %p97 = scmp.eq.s32.totalorder %s21, 1
      %p98 = por %p96, %p97
      %p100 = scmp.ne.s32.totalorder %s85, %s99
      %p101 = scmp.eq.s32.totalorder %s21, 0
      %p102 = por %p100, %p101
      %s103 = ssub.s32 %s22, %s34
      %s104 = ssub.s32 %s23, %s30
      %s105 = sor.u32 %s103, %s104
      %p106 = scmp.eq.s32.totalorder %s105, 0
      %s108 = sadd.s32 %s107, 1
      %s109 = scalar_select %p106, %s107, %s108
      %p112 = pneg %p106
      %p113 = scmp.eq.s32.totalorder %s15, 1
      %p114 = por %p112, %p113
      %p115 = scmp.ne.s32.totalorder %s107, %s110
      %p116 = scmp.eq.s32.totalorder %s15, 0
      %p117 = por %p115, %p116
      %p118 = scmp.ne.s32.totalorder %s107, %s110
      %p119 = scmp.eq.s32.totalorder %s20, 1
      %p120 = por %p118, %p119
      %p121 = scmp.ne.s32.totalorder %s110, %s111
      %p122 = scmp.eq.s32.totalorder %s20, 0
      %p123 = por %p121, %p122
      %p124 = scmp.ne.s32.totalorder %s110, %s111
      %p125 = scmp.eq.s32.totalorder %s21, 1
      %p126 = por %p124, %p125
      %p128 = scmp.ne.s32.totalorder %s111, %s127
      %p129 = scmp.eq.s32.totalorder %s21, 0
      %p130 = por %p128, %p129
      %p131 = scmp.le.s32.totalorder 1, %s15
      %p132 = scmp.lt.s32.totalorder %s15, 3
      %p133 = pnand %p131, %p132
      %p134 = pneg %p133
      // Predicated region
      $region9: #{tpu_custom_call.1} parent=5 // pred_check
        _
      $region10: #{tpu_custom_call.1} parent=5 // pred_check_branch
        %136 = sbr.rel (%p133) target = $region12
      $region11: #{tpu_custom_call.1} parent=5 // pred_region
        %s137 = ssub.s32 %s15, 1
        // Predicated region
        $region13: #{tpu_custom_call.1} parent=11 // pred_check
          %p138 = pneg %p74
        $region14: #{tpu_custom_call.1} parent=11 // pred_check_branch
          %140 = sbr.rel (%p138) target = $region16
        $region15: #{tpu_custom_call.1} parent=11 // pred_region
          _
        $region16: #{tpu_custom_call.1} parent=11 // pred_fallthru
          _
        // Predicated region
        $region17: #{tpu_custom_call.1} parent=11 // pred_check
          %p141 = pneg %p95
        $region18: #{tpu_custom_call.1} parent=11 // pred_check_branch
          %143 = sbr.rel (%p141) target = $region20
        $region19: #{tpu_custom_call.1} parent=11 // pred_region
          _
        $region20: #{tpu_custom_call.1} parent=11 // pred_fallthru
          _
      $region12: #{tpu_custom_call.1} parent=5 // pred_fallthru
        _
      %p144 = scmp.lt.s32.totalorder %s15, 2
      // Predicated region
      $region21: #{tpu_custom_call.1} parent=5 // pred_check
        %p145 = pneg %p144
      $region22: #{tpu_custom_call.1} parent=5 // pred_check_branch
        %147 = sbr.rel (%p145) target = $region24
      $region23: #{tpu_custom_call.1} parent=5 // pred_region
        // Predicated region
        $region25: #{tpu_custom_call.1} parent=23 // pred_check
          %p148 = pneg %p47
        $region26: #{tpu_custom_call.1} parent=23 // pred_check_branch
          %150 = sbr.rel (%p148) target = $region28
        $region27: #{tpu_custom_call.1} parent=23 // pred_region
          %s151 = sand.u32 %s37, 1
          %s152 = scalar_lea.sflag [#allocation6], %s151
          %s153 = sand.u32 %s37, 1
          %s154 = smul.addr %s153, 64
          %s155 = scalar_lea.vmem [#allocation5], %s154
          %s157 = ssub.s32 1024, 1024
          %158 = vsyncadd %s152, %s157
          %s159 = smul.addr %s22, 8
          %s160 = smul.addr %s159, 128
          %s161 = scalar_lea.hbm %s0, %s160
          %s162 = sshll.u32 %s155, 4
          %s163 = int_to_ptr.vmem [resolvable:$true] %s162
          %168 = dma.hbm_to_vmem [thread:$0]  %s161, 1024, %s163, %s152, 128, 128, 8
        $region28: #{tpu_custom_call.1} parent=23 // pred_fallthru
          _
      $region24: #{tpu_custom_call.1} parent=5 // pred_fallthru
        _
      %p169 = scmp.le.s32.totalorder 1, %s15
      %p170 = scmp.lt.s32.totalorder %s15, 3
      %p171 = pnand %p169, %p170
      %p172 = pneg %p171
      // Predicated region
      $region29: #{tpu_custom_call.1} parent=5 // pred_check
        _
      $region30: #{tpu_custom_call.1} parent=5 // pred_check_branch
        %174 = sbr.rel (%p171) target = $region32
      $region31: #{tpu_custom_call.1} parent=5 // pred_region
        %s175 = ssub.s32 %s15, 1
        %s176 = sand.u32 %s40, 1
        %s177 = scalar_lea.sflag [#allocation6], %s176
        %s178 = sand.u32 %s40, 1
        %s179 = smul.addr %s178, 64
        %s180 = scalar_lea.vmem [#allocation5], %s179
        // Predicated region
        $region33: #{tpu_custom_call.1} parent=31 // pred_check
          %p181 = pneg %p53
        $region34: #{tpu_custom_call.1} parent=31 // pred_check_branch
          %183 = sbr.rel (%p181) target = $region36
        $region35: #{tpu_custom_call.1} parent=31 // pred_region
          %184 = dma.done %s177, 1024
        $region36: #{tpu_custom_call.1} parent=31 // pred_fallthru
          _
        %s185 = sand.u32 %s40, 1
        %s186 = scalar_lea.sflag [#allocation6], %s185
        %s187 = sand.u32 %s40, 1
        %s188 = smul.addr %s187, 64
        %s189 = scalar_lea.vmem [#allocation5], %s188
        %p190 = pneg %p53
        %p191 = pneg %p50
        %p192 = pneg %p74
        %p193 = pneg %p71
        %p194 = pneg %p95
        %p195 = pneg %p92
        %p196 = pneg %p123
        %p197 = pneg %p120
        %s198 = sand.u32 %s110, 1
        %s199 = scalar_lea.sflag [#allocation7], %s198
        %s200 = sand.u32 %s110, 1
        %s201 = smul.addr %s200, 64
        %s202 = scalar_lea.vmem [#allocation8], %s201
        %s203 = smul.u32 8, %s25
        %p205 = scmp.eq.s32.totalorder %s25, 0
        // Predicated region
        $region37: #{tpu_custom_call.1} parent=31 // pred_check
          %p206 = pneg %p205
        $region38: #{tpu_custom_call.1} parent=31 // pred_check_branch
          %208 = sbr.rel (%p206) target = $region40
        $region39: #{tpu_custom_call.1} parent=31 // pred_region
          %v209 = vld [vmem:[%s180] sm:$0xff]
          %v210 = vld [vmem:[%s180 + $0x8] sm:$0xff]
          %v211 = vld [vmem:[%s180 + $0x10] sm:$0xff]
          %v212 = vld [vmem:[%s180 + $0x18] sm:$0xff]
          %v213 = vld [vmem:[%s180 + $0x20] sm:$0xff]
          %v214 = vld [vmem:[%s180 + $0x28] sm:$0xff]
          %v215 = vld [vmem:[%s180 + $0x30] sm:$0xff]
          %v216 = vld [vmem:[%s180 + $0x38] sm:$0xff]
          %v217 = vpack.c.bf16 %v210, %v209
          %v218 = vpack.c.bf16 %v212, %v211
          %v219 = vpack.c.bf16 %v214, %v213
          %v220 = vpack.c.bf16 %v216, %v215
          %v221 = vld [vmem:[%s1] sm:$0xf]
          %v222 = vld [vmem:[%s1 + $0x4] sm:$0xf]
          %v223 = vld [vmem:[%s1 + $0x8] sm:$0xf]
          %v224 = vld [vmem:[%s1 + $0xc] sm:$0xf]
          %v225 = vld [vmem:[%s1 + $0x10] sm:$0xf]
          %v226 = vld [vmem:[%s1 + $0x14] sm:$0xf]
          %v227 = vld [vmem:[%s1 + $0x18] sm:$0xf]
          %v228 = vld [vmem:[%s1 + $0x1c] sm:$0xf]
          %v237 = vunpack.c.l.b16 %v221
          %v238 = vunpack.c.l.b16 %v222
          %v239 = vunpack.c.l.b16 %v223
          %v240 = vunpack.c.l.b16 %v224
          %v241 = vunpack.c.l.b16 %v225
          %v242 = vunpack.c.l.b16 %v226
          %v243 = vunpack.c.l.b16 %v227
          %v244 = vunpack.c.l.b16 %v228
          %v245 = vpack.c.b16 %v238, %v237
          %v246 = vpack.c.b16 %v240, %v239
          %v247 = vpack.c.b16 %v242, %v241
          %v248 = vpack.c.b16 %v244, %v243
          %vm253 = vcmask 523264
          %v255 = vsel %vm253, %v217, 0
          %v258 = vsel %vm253, %v218, 0
          %v261 = vsel %vm253, %v219, 0
          %v264 = vsel %vm253, %v220, 0
          %266 = vmatprep.subr.bf16.mxu0 0
          %267 = vmatpush1.bf16.msra.mxu0 0
          %268 = vmatprep.subr.bf16.mxu0 0
          %269 = vmatpush1.bf16.msra.mxu0 0
          %270 = vmatprep.subr.bf16.mxu0 0
          %271 = vmatpush1.bf16.msra.mxu0 0
          %272 = vmatprep.subr.bf16.mxu0 0
          %273 = vmatpush1.bf16.msra.mxu0 0
          %274 = vmatprep.subr.bf16.mxu0 0
          %275 = vmatpush1.bf16.msra.mxu0 %v248
          %276 = vmatprep.subr.bf16.mxu0 0
          %277 = vmatpush1.bf16.msra.mxu0 %v247
          %278 = vmatprep.subr.bf16.mxu0 0
          %279 = vmatpush1.bf16.msra.mxu0 %v246
          %280 = vmatprep.subr.bf16.mxu0 0
          %281 = vmatpush1.bf16.msra.mxu0 %v245
          %282 = vmatprep.subr.bf16.mxu0 0
          %283 = vmatpush2.bf16.msra.mxu0 0
          %284 = vmatprep.subr.bf16.mxu0 0
          %285 = vmatpush2.bf16.msra.mxu0 0
          %286 = vmatprep.subr.bf16.mxu0 0
          %287 = vmatpush2.bf16.msra.mxu0 0
          %288 = vmatprep.subr.bf16.mxu0 0
          %289 = vmatpush2.bf16.msra.mxu0 0
          %290 = vmatprep.subr.bf16.mxu0 0
          %291 = vmatpush2.bf16.msra.mxu0 0
          %292 = vmatprep.subr.bf16.mxu0 0
          %293 = vmatpush2.bf16.msra.mxu0 0
          %294 = vmatprep.subr.bf16.mxu0 0
          %295 = vmatpush2.bf16.msra.mxu0 0
          %296 = vmatprep.subr.bf16.mxu0 0
          %297 = vmatpush2.bf16.msra.mxu0 0
          %298 = vmatprep.mubr.bf16.mxu0 0
          %299 = vmatmul.mubr.bf16.gmra.mxu0 %v255
          %v300 = vpop.f32.mrf.mxu0
          %v301 = vadd.f32 0.0, %v300
          %v302 = vpop.f32.mrf.mxu0
          %v303 = vpop.f32.mrf.mxu0
          %v304 = vadd.f32 0.0, %v303
          %v305 = vpop.f32.mrf.mxu0
          %306 = vmatprep.mubr.bf16.mxu0 0
          %307 = vmatmul.mubr.bf16.gmra.mxu0 %v258
          %v308 = vpop.f32.mrf.mxu0
          %v309 = vadd.f32 0.0, %v308
          %v310 = vpop.f32.mrf.mxu0
          %v311 = vpop.f32.mrf.mxu0
          %v312 = vadd.f32 0.0, %v311
          %v313 = vpop.f32.mrf.mxu0
          %314 = vmatprep.mubr.bf16.mxu0 0
          %315 = vmatmul.mubr.bf16.gmra.mxu0 %v261
          %v316 = vpop.f32.mrf.mxu0
          %v317 = vadd.f32 0.0, %v316
          %v318 = vpop.f32.mrf.mxu0
          %v319 = vpop.f32.mrf.mxu0
          %v320 = vadd.f32 0.0, %v319
          %v321 = vpop.f32.mrf.mxu0
          %322 = vmatprep.mubr.bf16.mxu0 0
          %323 = vmatmul.mubr.bf16.gmra.mxu0 %v264
          %v324 = vpop.f32.mrf.mxu0
          %v325 = vadd.f32 0.0, %v324
          %v326 = vpop.f32.mrf.mxu0
          %v327 = vpop.f32.mrf.mxu0
          %v328 = vadd.f32 0.0, %v327
          %v329 = vpop.f32.mrf.mxu0
          %330 = vdwg.mxu0
          %v331 = vpack.c.bf16 %v304, %v301
          %v332 = vpack.c.bf16 %v312, %v309
          %v333 = vpack.c.bf16 %v320, %v317
          %v334 = vpack.c.bf16 %v328, %v325
          %v339 = vunpack.c.l.b16 %v331
          %v340 = vunpack.c.h.b16 %v331
          %v341 = vunpack.c.l.b16 %v332
          %v342 = vunpack.c.h.b16 %v332
          %v343 = vunpack.c.l.b16 %v333
          %v344 = vunpack.c.h.b16 %v333
          %v345 = vunpack.c.l.b16 %v334
          %v346 = vunpack.c.h.b16 %v334
          %v347 = vpack.c.b16 %v339, %v339
          %v348 = vpack.c.b16 %v340, %v340
          %v349 = vpack.c.b16 %v341, %v341
          %v350 = vpack.c.b16 %v342, %v342
          %v351 = vpack.c.b16 %v343, %v343
          %v352 = vpack.c.b16 %v344, %v344
          %v353 = vpack.c.b16 %v345, %v345
          %v354 = vpack.c.b16 %v346, %v346
          %vm363 = vcmask 60416
          %364 = vst.msk [vmem:[#allocation2] sm:$0xf] %vm363, %v347
          %365 = vst.msk [vmem:[#allocation2 + $0x4] sm:$0xf] %vm363, %v348
          %366 = vst.msk [vmem:[#allocation2 + $0x8] sm:$0xf] %vm363, %v349
          %367 = vst.msk [vmem:[#allocation2 + $0xc] sm:$0xf] %vm363, %v350
          %368 = vst.msk [vmem:[#allocation2 + $0x10] sm:$0xf] %vm363, %v351
          %369 = vst.msk [vmem:[#allocation2 + $0x14] sm:$0xf] %vm363, %v352
          %370 = vst.msk [vmem:[#allocation2 + $0x18] sm:$0xf] %vm363, %v353
          %371 = vst.msk [vmem:[#allocation2 + $0x1c] sm:$0xf] %vm363, %v354
          %v372 = vmax.f32 %v301, %v309
          %v373 = vmax.f32 %v304, %v312
          %v374 = vmax.f32 %v317, %v325
          %v375 = vmax.f32 %v320, %v328
          %v376 = vmax.f32 %v372, %v374
          %v377 = vmax.f32 %v373, %v375
          %380 = vrot.lane.b32.xlu0 %v376, 120
          %v381 = vpop.permute.xlu0 %380
          %382 = vrot.lane.b32.xlu0 %v377, 120
          %v383 = vpop.permute.xlu0 %382
          %386 = vxpose.xlu0.b32.start [1/16] %v381, 128
          %387 = vxpose.xlu0.b32.cont [2/16] %v383, 128
          %388 = vxpose.xlu0.b32.cont [3/16] 0.0, 128
          %389 = vxpose.xlu0.b32.cont [4/16] 0.0, 128
          %390 = vxpose.xlu0.b32.cont [5/16] 0.0, 128
          %391 = vxpose.xlu0.b32.cont [6/16] 0.0, 128
          %392 = vxpose.xlu0.b32.cont [7/16] 0.0, 128
          %393 = vxpose.xlu0.b32.cont [8/16] 0.0, 128
          %394 = vxpose.xlu0.b32.cont [9/16] 0.0, 128
          %395 = vxpose.xlu0.b32.cont [10/16] 0.0, 128
          %396 = vxpose.xlu0.b32.cont [11/16] 0.0, 128
          %397 = vxpose.xlu0.b32.cont [12/16] 0.0, 128
          %398 = vxpose.xlu0.b32.cont [13/16] 0.0, 128
          %399 = vxpose.xlu0.b32.cont [14/16] 0.0, 128
          %400 = vxpose.xlu0.b32.cont [15/16] 0.0, 128
          %401 = vxpose.xlu0.b32.end [16/16] 0.0, 128
          %v402 = vpop.trf.xlu0
          %v403 = vpop.trf.xlu0
          %v404 = vpop.trf.xlu0
          %v405 = vpop.trf.xlu0
          %v406 = vpop.trf.xlu0
          %v407 = vpop.trf.xlu0
          %v408 = vpop.trf.xlu0
          %v409 = vpop.trf.xlu0
          %v410 = vpop.trf.xlu0
          %v411 = vpop.trf.xlu0
          %v412 = vpop.trf.xlu0
          %v413 = vpop.trf.xlu0
          %v414 = vpop.trf.xlu0
          %v415 = vpop.trf.xlu0
          %v416 = vpop.trf.xlu0
          %v417 = vpop.trf.xlu0
          %v418 = vpack.c.bf16 %v402, %v402
          %vm419 = vcmask 125952
          %420 = vst.msk [vmem:[#allocation3] sm:$0xf] %vm419, %v418
          %v421 = vpack.c.bf16 %v377, %v376
          %v423 = vunpack.c.l.b16 %v421
          %v424 = vunpack.c.h.b16 %v421
          %v425 = vpack.c.b16 %v423, %v423
          %v426 = vpack.c.b16 %v424, %v424
          %427 = vrot.lane.b32.xlu0 %v425, 112
          %v428 = vpop.permute.xlu0 %427
          %429 = vrot.lane.b32.xlu0 %v426, 112
          %v430 = vpop.permute.xlu0 %429
          %vm433 = vcmask 257024
          %434 = vst.msk [vmem:[#allocation4] sm:$0xf] %vm433, %v428
          %435 = vst.msk [vmem:[#allocation4 + $0x4] sm:$0xf] %vm433, %v430
        $region40: #{tpu_custom_call.1} parent=31 // pred_fallthru
          _
        %s436 = smul.u32 %s25, 64
        %s437 = sshra.s32 %s436, 3
        %s438 = sand.u32 %s436, 7
        %s439 = smul.addr %s437, 4
        %s440 = scalar_lea.vmem [#allocation2], %s439
        %v441 = vld [vmem:[%s440] sm:$0xf]
        %v442 = vld [vmem:[%s440 + $0x4] sm:$0xf]
        %v443 = vld [vmem:[%s440 + $0x8] sm:$0xf]
        %v444 = vld [vmem:[%s440 + $0xc] sm:$0xf]
        %v445 = vld [vmem:[%s440 + $0x10] sm:$0xf]
        %v446 = vld [vmem:[%s440 + $0x14] sm:$0xf]
        %v447 = vld [vmem:[%s440 + $0x18] sm:$0xf]
        %v448 = vld [vmem:[%s440 + $0x1c] sm:$0xf]
        %s449 = scalar_lea.vmem %s180, %s436 [#allocation5]
        %v450 = vld [vmem:[%s449] sm:$0xff]
        %v451 = vld [vmem:[%s449 + $0x8] sm:$0xff]
        %v452 = vld [vmem:[%s449 + $0x10] sm:$0xff]
        %v453 = vld [vmem:[%s449 + $0x18] sm:$0xff]
        %v454 = vld [vmem:[%s449 + $0x20] sm:$0xff]
        %v455 = vld [vmem:[%s449 + $0x28] sm:$0xff]
        %v456 = vld [vmem:[%s449 + $0x30] sm:$0xff]
        %v457 = vld [vmem:[%s449 + $0x38] sm:$0xff]
        %v458 = vld [vmem:[#allocation3] sm:$0xf]
        %v467 = vunpack.c.l.b16 %v441
        %v468 = vunpack.c.l.b16 %v442
        %v469 = vunpack.c.l.b16 %v443
        %v470 = vunpack.c.l.b16 %v444
        %v471 = vunpack.c.l.b16 %v445
        %v472 = vunpack.c.l.b16 %v446
        %v473 = vunpack.c.l.b16 %v447
        %v474 = vunpack.c.l.b16 %v448
        %v475 = vpack.c.b16 %v468, %v467
        %v476 = vpack.c.b16 %v470, %v469
        %v477 = vpack.c.b16 %v472, %v471
        %v478 = vpack.c.b16 %v474, %v473
        %vm479 = vcmask 64512
        %v481 = vsel %vm479, %v475, 0
        %v484 = vsel %vm479, %v476, 0
        %v487 = vsel %vm479, %v477, 0
        %v490 = vsel %vm479, %v478, 0
        %vm492 = vcmask 1043456
        %v494 = vsel %vm492, %v458, 0
        %496 = vmatprep.subr.bf16.mxu0 0
        %497 = vmatpush1.bf16.msra.mxu0 0
        %498 = vmatprep.subr.bf16.mxu0 0
        %499 = vmatpush1.bf16.msra.mxu0 0
        %500 = vmatprep.subr.bf16.mxu0 0
        %501 = vmatpush1.bf16.msra.mxu0 0
        %502 = vmatprep.subr.bf16.mxu0 0
        %503 = vmatpush1.bf16.msra.mxu0 0
        %504 = vmatprep.subr.bf16.mxu0 0
        %505 = vmatpush1.bf16.msra.mxu0 0
        %506 = vmatprep.subr.bf16.mxu0 0
        %507 = vmatpush1.bf16.msra.mxu0 0
        %508 = vmatprep.subr.bf16.mxu0 0
        %509 = vmatpush1.bf16.msra.mxu0 0
        %510 = vmatprep.subr.bf16.mxu0 0
        %511 = vmatpush1.bf16.msra.mxu0 %v494
        %512 = vmatprep.subr.bf16.mxu0 0
        %513 = vmatpush2.bf16.msra.mxu0 0
        %514 = vmatprep.subr.bf16.mxu0 0
        %515 = vmatpush2.bf16.msra.mxu0 0
        %516 = vmatprep.subr.bf16.mxu0 0
        %517 = vmatpush2.bf16.msra.mxu0 0
        %518 = vmatprep.subr.bf16.mxu0 0
        %519 = vmatpush2.bf16.msra.mxu0 0
        %520 = vmatprep.subr.bf16.mxu0 0
        %521 = vmatpush2.bf16.msra.mxu0 0
        %522 = vmatprep.subr.bf16.mxu0 0
        %523 = vmatpush2.bf16.msra.mxu0 0
        %524 = vmatprep.subr.bf16.mxu0 0
        %525 = vmatpush2.bf16.msra.mxu0 0
        %526 = vmatprep.subr.bf16.mxu0 0
        %527 = vmatpush2.bf16.msra.mxu0 0
        %528 = vmatprep.mubr.bf16.mxu0 0
        %529 = vmatmul.mubr.bf16.gmra.mxu0 %v481
        %v530 = vpop.f32.mrf.mxu0
        %v531 = vadd.f32 0.0, %v530
        %v532 = vpop.f32.mrf.mxu0
        %v533 = vpop.f32.mrf.mxu0
        %v534 = vadd.f32 0.0, %v533
        %v535 = vpop.f32.mrf.mxu0
        %536 = vmatprep.mubr.bf16.mxu0 0
        %537 = vmatmul.mubr.bf16.gmra.mxu0 %v484
        %v538 = vpop.f32.mrf.mxu0
        %v539 = vadd.f32 0.0, %v538
        %v540 = vpop.f32.mrf.mxu0
        %v541 = vpop.f32.mrf.mxu0
        %v542 = vadd.f32 0.0, %v541
        %v543 = vpop.f32.mrf.mxu0
        %544 = vmatprep.mubr.bf16.mxu0 0
        %545 = vmatmul.mubr.bf16.gmra.mxu0 %v487
        %v546 = vpop.f32.mrf.mxu0
        %v547 = vadd.f32 0.0, %v546
        %v548 = vpop.f32.mrf.mxu0
        %v549 = vpop.f32.mrf.mxu0
        %v550 = vadd.f32 0.0, %v549
        %v551 = vpop.f32.mrf.mxu0
        %552 = vmatprep.mubr.bf16.mxu0 0
        %553 = vmatmul.mubr.bf16.gmra.mxu0 %v490
        %v554 = vpop.f32.mrf.mxu0
        %v555 = vadd.f32 0.0, %v554
        %v556 = vpop.f32.mrf.mxu0
        %v557 = vpop.f32.mrf.mxu0
        %v558 = vadd.f32 0.0, %v557
        %v559 = vpop.f32.mrf.mxu0
        %560 = vdwg.mxu0
        %vm561 = vcmask 130048
        %v562 = vsel %vm561, %v531, -inf
        %563 = vmax.xlane.f32.xlu0 %v562
        %v564 = vpop.xlane.xlu0 %563
        %v565 = vsel %vm561, %v534, -inf
        %566 = vmax.xlane.f32.xlu0 %v565
        %v567 = vpop.xlane.xlu0 %566
        %v568 = vsel %vm561, %v539, -inf
        %569 = vmax.xlane.f32.xlu0 %v568
        %v570 = vpop.xlane.xlu0 %569
        %v571 = vsel %vm561, %v542, -inf
        %572 = vmax.xlane.f32.xlu0 %v571
        %v573 = vpop.xlane.xlu0 %572
        %v574 = vsel %vm561, %v547, -inf
        %575 = vmax.xlane.f32.xlu0 %v574
        %v576 = vpop.xlane.xlu0 %575
        %v577 = vsel %vm561, %v550, -inf
        %578 = vmax.xlane.f32.xlu0 %v577
        %v579 = vpop.xlane.xlu0 %578
        %v580 = vsel %vm561, %v555, -inf
        %581 = vmax.xlane.f32.xlu0 %v580
        %v582 = vpop.xlane.xlu0 %581
        %v583 = vsel %vm561, %v558, -inf
        %584 = vmax.xlane.f32.xlu0 %v583
        %v585 = vpop.xlane.xlu0 %584
        %v586 = vsub.f32 %v531, %v564
        %v587 = vsub.f32 %v534, %v567
        %v588 = vsub.f32 %v539, %v570
        %v589 = vsub.f32 %v542, %v573
        %v590 = vsub.f32 %v547, %v576
        %v591 = vsub.f32 %v550, %v579
        %v592 = vsub.f32 %v555, %v582
        %v593 = vsub.f32 %v558, %v585
        %v594 = vmul.f32 %v586, 1.442695
        %v595 = vpow.pop %v594
        %v596 = vmul.f32 %v587, 1.442695
        %v597 = vpow.pop %v596
        %v598 = vmul.f32 %v588, 1.442695
        %v599 = vpow.pop %v598
        %v600 = vmul.f32 %v589, 1.442695
        %v601 = vpow.pop %v600
        %v602 = vmul.f32 %v590, 1.442695
        %v603 = vpow.pop %v602
        %v604 = vmul.f32 %v591, 1.442695
        %v605 = vpow.pop %v604
        %v606 = vmul.f32 %v592, 1.442695
        %v607 = vpow.pop %v606
        %v608 = vmul.f32 %v593, 1.442695
        %v609 = vpow.pop %v608
        %v610 = vsel %vm561, %v595, 0.0
        %611 = vadd.xlane.f32.xlu0 %v610
        %v612 = vpop.xlane.xlu0 %611
        %v613 = vsel %vm561, %v597, 0.0
        %614 = vadd.xlane.f32.xlu0 %v613
        %v615 = vpop.xlane.xlu0 %614
        %v616 = vsel %vm561, %v599, 0.0
        %617 = vadd.xlane.f32.xlu0 %v616
        %v618 = vpop.xlane.xlu0 %617
        %v619 = vsel %vm561, %v601, 0.0
        %620 = vadd.xlane.f32.xlu0 %v619
        %v621 = vpop.xlane.xlu0 %620
        %v622 = vsel %vm561, %v603, 0.0
        %623 = vadd.xlane.f32.xlu0 %v622
        %v624 = vpop.xlane.xlu0 %623
        %v625 = vsel %vm561, %v605, 0.0
        %626 = vadd.xlane.f32.xlu0 %v625
        %v627 = vpop.xlane.xlu0 %626
        %v628 = vsel %vm561, %v607, 0.0
        %629 = vadd.xlane.f32.xlu0 %v628
        %v630 = vpop.xlane.xlu0 %629
        %v631 = vsel %vm561, %v609, 0.0
        %632 = vadd.xlane.f32.xlu0 %v631
        %v633 = vpop.xlane.xlu0 %632
        %v634 = vrcp.pop %v612
        %v635 = vrcp.pop %v615
        %v636 = vrcp.pop %v618
        %v637 = vrcp.pop %v621
        %v638 = vrcp.pop %v624
        %v639 = vrcp.pop %v627
        %v640 = vrcp.pop %v630
        %v641 = vrcp.pop %v633
        %v642 = vmul.f32 %v595, %v634
        %v643 = vmul.f32 %v597, %v635
        %v644 = vmul.f32 %v599, %v636
        %v645 = vmul.f32 %v601, %v637
        %v646 = vmul.f32 %v603, %v638
        %v647 = vmul.f32 %v605, %v639
        %v648 = vmul.f32 %v607, %v640
        %v649 = vmul.f32 %v609, %v641
        %v650 = vpack.c.bf16 %v643, %v642
        %v651 = vpack.c.bf16 %v645, %v644
        %v652 = vpack.c.bf16 %v647, %v646
        %v653 = vpack.c.bf16 %v649, %v648
        %v654 = vld [vmem:[#allocation4] sm:$0xf]
        %v655 = vld [vmem:[#allocation4 + $0x4] sm:$0xf]
        %v658 = vunpack.c.l.b16 %v654
        %v659 = vunpack.c.l.b16 %v655
        %v660 = vpack.c.b16 %v659, %v658
        %v663 = vsel %vm561, %v650, 0
        %v666 = vsel %vm561, %v651, 0
        %v669 = vsel %vm561, %v652, 0
        %v672 = vsel %vm561, %v653, 0
        %674 = vmatprep.subr.bf16.mxu0 0
        %675 = vmatpush1.bf16.msra.mxu0 0
        %676 = vmatprep.subr.bf16.mxu0 0
        %677 = vmatpush1.bf16.msra.mxu0 0
        %678 = vmatprep.subr.bf16.mxu0 0
        %679 = vmatpush1.bf16.msra.mxu0 0
        %680 = vmatprep.subr.bf16.mxu0 0
        %681 = vmatpush1.bf16.msra.mxu0 0
        %682 = vmatprep.subr.bf16.mxu0 0
        %683 = vmatpush1.bf16.msra.mxu0 0
        %684 = vmatprep.subr.bf16.mxu0 0
        %685 = vmatpush1.bf16.msra.mxu0 0
        %686 = vmatprep.subr.bf16.mxu0 0
        %687 = vmatpush1.bf16.msra.mxu0 0
        %688 = vmatprep.subr.bf16.mxu0 0
        %689 = vmatpush1.bf16.msra.mxu0 %v660
        %690 = vmatprep.subr.bf16.mxu0 0
        %691 = vmatpush2.bf16.msra.mxu0 0
        %692 = vmatprep.subr.bf16.mxu0 0
        %693 = vmatpush2.bf16.msra.mxu0 0
        %694 = vmatprep.subr.bf16.mxu0 0
        %695 = vmatpush2.bf16.msra.mxu0 0
        %696 = vmatprep.subr.bf16.mxu0 0
        %697 = vmatpush2.bf16.msra.mxu0 0
        %698 = vmatprep.subr.bf16.mxu0 0
        %699 = vmatpush2.bf16.msra.mxu0 0
        %700 = vmatprep.subr.bf16.mxu0 0
        %701 = vmatpush2.bf16.msra.mxu0 0
        %702 = vmatprep.subr.bf16.mxu0 0
        %703 = vmatpush2.bf16.msra.mxu0 0
        %704 = vmatprep.subr.bf16.mxu0 0
        %705 = vmatpush2.bf16.msra.mxu0 0
        %706 = vmatprep.mubr.bf16.mxu0 0
        %707 = vmatmul.mubr.bf16.gmra.mxu0 %v663
        %v708 = vpop.f32.mrf.mxu0
        %v709 = vadd.f32 0.0, %v708
        %v710 = vpop.f32.mrf.mxu0
        %v711 = vpop.f32.mrf.mxu0
        %v712 = vadd.f32 0.0, %v711
        %v713 = vpop.f32.mrf.mxu0
        %714 = vmatprep.mubr.bf16.mxu0 0
        %715 = vmatmul.mubr.bf16.gmra.mxu0 %v666
        %v716 = vpop.f32.mrf.mxu0
        %v717 = vadd.f32 0.0, %v716
        %v718 = vpop.f32.mrf.mxu0
        %v719 = vpop.f32.mrf.mxu0
        %v720 = vadd.f32 0.0, %v719
        %v721 = vpop.f32.mrf.mxu0
        %722 = vmatprep.mubr.bf16.mxu0 0
        %723 = vmatmul.mubr.bf16.gmra.mxu0 %v669
        %v724 = vpop.f32.mrf.mxu0
        %v725 = vadd.f32 0.0, %v724
        %v726 = vpop.f32.mrf.mxu0
        %v727 = vpop.f32.mrf.mxu0
        %v728 = vadd.f32 0.0, %v727
        %v729 = vpop.f32.mrf.mxu0
        %730 = vmatprep.mubr.bf16.mxu0 0
        %731 = vmatmul.mubr.bf16.gmra.mxu0 %v672
        %v732 = vpop.f32.mrf.mxu0
        %v733 = vadd.f32 0.0, %v732
        %v734 = vpop.f32.mrf.mxu0
        %v735 = vpop.f32.mrf.mxu0
        %v736 = vadd.f32 0.0, %v735
        %v737 = vpop.f32.mrf.mxu0
        %738 = vdwg.mxu0
        %v739 = vpack.c.bf16 %v712, %v709
        %v740 = vpack.c.bf16 %v720, %v717
        %v741 = vpack.c.bf16 %v728, %v725
        %v742 = vpack.c.bf16 %v736, %v733
        %v743 = vld [vmem:[%s2] sm:$0xf]
        %v744 = vld [vmem:[%s2 + $0x4] sm:$0xf]
        %v745 = vld [vmem:[%s2 + $0x8] sm:$0xf]
        %v746 = vld [vmem:[%s2 + $0xc] sm:$0xf]
        %v751 = vunpack.c.l.b16 %v743
        %v752 = vunpack.c.l.b16 %v744
        %v753 = vunpack.c.l.b16 %v745
        %v754 = vunpack.c.l.b16 %v746
        %v755 = vpack.c.b16 %v752, %v751
        %v756 = vpack.c.b16 %v754, %v753
        %vm759 = vcmask 261120
        %v761 = vsel %vm759, %v739, 0
        %v764 = vsel %vm759, %v740, 0
        %v767 = vsel %vm759, %v741, 0
        %v770 = vsel %vm759, %v742, 0
        %772 = vmatprep.subr.bf16.mxu0 0
        %773 = vmatpush1.bf16.msra.mxu0 0
        %774 = vmatprep.subr.bf16.mxu0 0
        %775 = vmatpush1.bf16.msra.mxu0 0
        %776 = vmatprep.subr.bf16.mxu0 0
        %777 = vmatpush1.bf16.msra.mxu0 0
        %778 = vmatprep.subr.bf16.mxu0 0
        %779 = vmatpush1.bf16.msra.mxu0 0
        %780 = vmatprep.subr.bf16.mxu0 0
        %781 = vmatpush1.bf16.msra.mxu0 0
        %782 = vmatprep.subr.bf16.mxu0 0
        %783 = vmatpush1.bf16.msra.mxu0 0
        %784 = vmatprep.subr.bf16.mxu0 0
        %785 = vmatpush1.bf16.msra.mxu0 %v756
        %786 = vmatprep.subr.bf16.mxu0 0
        %787 = vmatpush1.bf16.msra.mxu0 %v755
        %788 = vmatprep.subr.bf16.mxu0 0
        %789 = vmatpush2.bf16.msra.mxu0 0
        %790 = vmatprep.subr.bf16.mxu0 0
        %791 = vmatpush2.bf16.msra.mxu0 0
        %792 = vmatprep.subr.bf16.mxu0 0
        %793 = vmatpush2.bf16.msra.mxu0 0
        %794 = vmatprep.subr.bf16.mxu0 0
        %795 = vmatpush2.bf16.msra.mxu0 0
        %796 = vmatprep.subr.bf16.mxu0 0
        %797 = vmatpush2.bf16.msra.mxu0 0
        %798 = vmatprep.subr.bf16.mxu0 0
        %799 = vmatpush2.bf16.msra.mxu0 0
        %800 = vmatprep.subr.bf16.mxu0 0
        %801 = vmatpush2.bf16.msra.mxu0 0
        %802 = vmatprep.subr.bf16.mxu0 0
        %803 = vmatpush2.bf16.msra.mxu0 0
        %804 = vmatprep.mubr.bf16.mxu0 0
        %805 = vmatmul.mubr.bf16.gmra.mxu0 %v761
        %v806 = vpop.f32.mrf.mxu0
        %v807 = vadd.f32 %v450, %v806
        %v808 = vpop.f32.mrf.mxu0
        %v809 = vpop.f32.mrf.mxu0
        %v810 = vadd.f32 %v451, %v809
        %v811 = vpop.f32.mrf.mxu0
        %812 = vmatprep.mubr.bf16.mxu0 0
        %813 = vmatmul.mubr.bf16.gmra.mxu0 %v764
        %v814 = vpop.f32.mrf.mxu0
        %v815 = vadd.f32 %v452, %v814
        %v816 = vpop.f32.mrf.mxu0
        %v817 = vpop.f32.mrf.mxu0
        %v818 = vadd.f32 %v453, %v817
        %v819 = vpop.f32.mrf.mxu0
        %820 = vmatprep.mubr.bf16.mxu0 0
        %821 = vmatmul.mubr.bf16.gmra.mxu0 %v767
        %v822 = vpop.f32.mrf.mxu0
        %v823 = vadd.f32 %v454, %v822
        %v824 = vpop.f32.mrf.mxu0
        %v825 = vpop.f32.mrf.mxu0
        %v826 = vadd.f32 %v455, %v825
        %v827 = vpop.f32.mrf.mxu0
        %828 = vmatprep.mubr.bf16.mxu0 0
        %829 = vmatmul.mubr.bf16.gmra.mxu0 %v770
        %v830 = vpop.f32.mrf.mxu0
        %v831 = vadd.f32 %v456, %v830
        %v832 = vpop.f32.mrf.mxu0
        %v833 = vpop.f32.mrf.mxu0
        %v834 = vadd.f32 %v457, %v833
        %v835 = vpop.f32.mrf.mxu0
        %836 = vdwg.mxu0
        %vm837 = vcmask 523264
        %838 = vst.msk [vmem:[%s202] sm:$0xff] %vm837, %v807
        %839 = vst.msk [vmem:[%s202 + $0x8] sm:$0xff] %vm837, %v810
        %840 = vst.msk [vmem:[%s202 + $0x10] sm:$0xff] %vm837, %v815
        %841 = vst.msk [vmem:[%s202 + $0x18] sm:$0xff] %vm837, %v818
        %842 = vst.msk [vmem:[%s202 + $0x20] sm:$0xff] %vm837, %v823
        %843 = vst.msk [vmem:[%s202 + $0x28] sm:$0xff] %vm837, %v826
        %844 = vst.msk [vmem:[%s202 + $0x30] sm:$0xff] %vm837, %v831
        %845 = vst.msk [vmem:[%s202 + $0x38] sm:$0xff] %vm837, %v834
        %s846 = sand.u32 %s110, 1
        %s847 = scalar_lea.sflag [#allocation7], %s846
        %s848 = sand.u32 %s110, 1
        %s849 = smul.addr %s848, 64
        %s850 = scalar_lea.vmem [#allocation8], %s849
        // Predicated region
        $region41: #{tpu_custom_call.1} parent=31 // pred_check
          %p851 = pneg %p120
        $region42: #{tpu_custom_call.1} parent=31 // pred_check_branch
          %853 = sbr.rel (%p851) target = $region44
        $region43: #{tpu_custom_call.1} parent=31 // pred_region
          %s854 = smul.u32 8, %s25
          %s856 = ssub.s32 1024, 1024
          %857 = vsyncadd %s847, %s856
          %s858 = smul.addr %s24, 8
          %s859 = sadd.s32 %s854, %s858
          %s860 = smul.addr %s859, 128
          %s861 = scalar_lea.hbm %s3, %s860
          %s862 = sshll.u32 %s850, 4
          %s863 = int_to_ptr.vmem [resolvable:$true] %s862
          %868 = dma.vmem_to_hbm [thread:$0]  %s863, 1024, %s861, %s847, 128, 128, 8
        $region44: #{tpu_custom_call.1} parent=31 // pred_fallthru
          _
      $region32: #{tpu_custom_call.1} parent=5 // pred_fallthru
        _
      %p869 = scmp.le.s32.totalorder 2, %s15
      // Predicated region
      $region45: #{tpu_custom_call.1} parent=5 // pred_check
        %p870 = pneg %p869
      $region46: #{tpu_custom_call.1} parent=5 // pred_check_branch
        %872 = sbr.rel (%p870) target = $region48
      $region47: #{tpu_custom_call.1} parent=5 // pred_region
        %s873 = ssub.s32 %s15, 2
        // Predicated region
        $region49: #{tpu_custom_call.1} parent=47 // pred_check
          %p874 = pneg %p126
        $region50: #{tpu_custom_call.1} parent=47 // pred_check_branch
          %876 = sbr.rel (%p874) target = $region52
        $region51: #{tpu_custom_call.1} parent=47 // pred_region
          %s877 = sand.u32 %s111, 1
          %s878 = scalar_lea.sflag [#allocation7], %s877
          %s879 = sand.u32 %s111, 1
          %s880 = smul.addr %s879, 64
          %s881 = scalar_lea.vmem [#allocation8], %s880
          %882 = dma.done %s878, 1024
        $region52: #{tpu_custom_call.1} parent=47 // pred_fallthru
          _
      $region48: #{tpu_custom_call.1} parent=5 // pred_fallthru
        _
    $region6: #{tpu_custom_call.1} parent=1 // loop_footer
      %s19 = sadd.s32 1, %s15
    $region7: #{tpu_custom_call.1} parent=1 // loop_footer_branch
      %14 = sbr.rel target = $region3
    $region8: #{tpu_custom_call.1} parent=1 // loop_exit
      _
    %883 = vsyncpa [#allocation6], 1
    %s884 = scalar_lea.sflag [#allocation6], 1
    %885 = vsyncpa %s884, 1
    %886 = vsyncpa [#allocation7], 1
    %s887 = scalar_lea.sflag [#allocation7], 1
    %888 = vsyncpa %s887, 1

</llo_original>
